<compile_context>
chip_gen: v6e
topology: v6e:2x2x1
jax: 0.10.0
libtpu: 0.0.40
codegen_flags: <defaults>
</compile_context>

<pallas_src>
import functools

import jax
import jax.numpy as jnp
from jax import lax
from jax.experimental import pallas as pl
from jax.experimental.pallas import tpu as pltpu

LANES = 128
_ROW_ALIGN = 32          # lcm of sublane tiles: f32 (8) / bf16 (16) / int8 (32)


def _dice_partial_kernel(x_ref, t_ref, out_ref, *, n_classes, apply_softmax,
                         needs_mask, hw):
    """One grid step == one (batch, pixel-tile) pair; all classes in-register.

    x_ref  : VMEM (C, TM, 128)  -- predictions in their native dtype (bf16/f32)
    t_ref  : VMEM (TM, 128)     -- integer labels in their native dtype (int8..)
    out_ref: VMEM (3*C, 128) f32 -- per-class lane partial sums:
               rows [0,     C)   : intersection = sum(p * onehot)
               rows [C,   2*C)   : sum(p * p)
               rows [2*C, 3*C)   : sum(onehot)  (== sum(onehot^2))
    """
    tm = x_ref.shape[1]
    p = x_ref[...].astype(jnp.float32)            # (C, TM, 128), in-kernel upcast
    t = t_ref[...]                                # (TM, 128) integer labels

    if apply_softmax:
        # Fused channel softmax; exp + reciprocal go to the EUP slot.
        m = jnp.max(p, axis=0, keepdims=True)
        e = jnp.exp(p - m)
        denom = jnp.sum(e, axis=0, keepdims=True)
        r = pl.reciprocal(denom, approx=True)     # EUP seed ...
        r = r * (2.0 - denom * r)                 # ... + 1 Newton step (~f32 exact)
        p = e * r

    if needs_mask:
        # Tail-tile / 128-alignment-pad pixels hold undefined (or padded) data
        # in both x and t: zero them out of every partial sum once, up front.
        row = lax.broadcasted_iota(jnp.int32, (tm, LANES), 0)
        lane = lax.broadcasted_iota(jnp.int32, (tm, LANES), 1)
        pix = (pl.program_id(1) * tm + row) * LANES + lane
        valid = pix < hw
        p = jnp.where(valid[None, :, :], p, 0.0)

    # Hoisted out of the class loop: one dense pass for sum(p*p) -> (C, 128).
    psq_all = jnp.sum(p * p, axis=1)

    inter_rows = []
    cnt_rows = []
    # TODO(synk): for very large n_classes (>32) with softmax=False, switch to a
    # lax.fori_loop reading x_ref[c] per iteration to bound vreg/VMEM pressure.
    for c in range(n_classes):                    # unrolled; n_classes is static
        onehot = t == c
        if needs_mask:
            onehot = jnp.logical_and(onehot, valid)
        pc = p[c]                                 # (TM, 128), already masked
        inter_rows.append(
            jnp.sum(jnp.where(onehot, pc, 0.0), axis=0, keepdims=True))
        cnt_rows.append(
            jnp.sum(jnp.where(onehot, 1.0, 0.0), axis=0, keepdims=True))

    # Single dense (3C, 128) store instead of 3*C masked single-sublane stores.
    out_ref[...] = jnp.concatenate(inter_rows + [psq_all] + cnt_rows, axis=0)


def _tpu_vmem_budget():
    """Per-generation tile budget + explicit scoped-VMEM limit."""
    try:
        cap = int(pltpu.get_tpu_info().vmem_capacity_bytes)
    except Exception:  # not on TPU / API unavailable -> conservative (v7x) size
        cap = 64 * 1024 * 1024
    budget = min(cap // 2, 64 * 1024 * 1024)      # tile sizing incl. f32 temps
    limit = min(cap - 8 * 1024 * 1024, budget + 32 * 1024 * 1024)
    return budget, max(limit, 32 * 1024 * 1024)


def _pick_tile_rows(mpix, n_classes, x_bytes, t_bytes, budget_bytes, want_tiles):
    """Rows (of 128 lanes) per pixel tile.

    Estimate per row of 128 pixels: double-buffered x & t DMA blocks plus ~4
    live (C, ., 128) f32 temporaries (p / exp / p*p / select) and the mask.
    Rows are rounded to 32 so f32/bf16/int8 blocks never need a relayout.
    """
    per_row = LANES * (2 * n_classes * x_bytes + 2 * t_bytes
                       + 4 * n_classes * 4 + 16)
    cap = int(budget_bytes // per_row)
    cap = max(_ROW_ALIGN, min(cap, 2048))         # >2048 rows: no further gain
    cap = (cap // _ROW_ALIGN) * _ROW_ALIGN
    if want_tiles > 1:
        # v7x megacore: guarantee >= want_tiles parallel grid steps.
        split = -(-mpix // want_tiles)
        split = max(_ROW_ALIGN, -(-split // _ROW_ALIGN) * _ROW_ALIGN)
        cap = min(cap, split)
    if mpix <= cap:
        return mpix, 1
    return cap, -(-mpix // cap)


def dice_loss(inputs, target, n_classes, weight=None, softmax=False):
    """JAX/Pallas equivalent of DiceLoss.forward.

    inputs : (B, C, H, W) float predictions (bf16/f32; logits if softmax=True)
    target : (B, 1, H, W) or (B, H, W) integer labels in [0, n_classes)
             (int8 recommended -- streamed to the kernel in its native dtype)
    returns: scalar f32 loss
    """
    B, C, H, W = inputs.shape
    assert C == n_classes, "predict & target shape do not match"

    if weight is None:
        weight = [1.0] * n_classes
    w = jnp.asarray(weight, dtype=jnp.float32)

    # Predictions keep their native (narrow) dtype; the kernel upcasts to f32.
    if not jnp.issubdtype(inputs.dtype, jnp.floating):
        inputs = inputs.astype(jnp.float32)

    hw = H * W
    x = inputs.reshape(B, C, hw)                  # free reshape, no transpose
    t = target.reshape(B, hw)                     # keep caller's (narrow) dtype

    mpix = pl.cdiv(hw, LANES)                     # rows of 128 lanes
    hw128 = mpix * LANES
    if hw128 != hw:
        # TODO(synk): the (rows, 128) lane layout needs a 128-aligned H*W; this
        # minimal (<128 px) pad is the only remaining extra pass over x and is
        # skipped entirely for 128-aligned images.
        x = jnp.pad(x, ((0, 0), (0, 0), (0, hw128 - hw)))
        t = jnp.pad(t, ((0, 0), (0, hw128 - hw)))
    x = x.reshape(B, C, mpix, LANES)
    t = t.reshape(B, mpix, LANES)

    budget, vmem_limit = _tpu_vmem_budget()
    tm, n_m = _pick_tile_rows(
        mpix, n_classes,
        x_bytes=x.dtype.itemsize, t_bytes=t.dtype.itemsize,
        budget_bytes=budget, want_tiles=2 if B == 1 else 1)
    needs_mask = (n_m * tm * LANES != hw)         # ragged tail / 128-pad region

    kernel = functools.partial(
        _dice_partial_kernel, n_classes=n_classes,
        apply_softmax=bool(softmax), needs_mask=bool(needs_mask), hw=hw)

    partials = pl.pallas_call(
        kernel,
        out_shape=jax.ShapeDtypeStruct((B, n_m, 3 * n_classes, LANES),
                                       jnp.float32),
        grid=(B, n_m),
        in_specs=[
            # (1, C, TM, 128) prediction block; batch dim squeezed.  The class
            # "transpose" is expressed here instead of materializing it in HBM.
            pl.BlockSpec((None, C, tm, LANES), lambda b, m: (b, 0, m, 0)),
            # (1, TM, 128) label block, read exactly once per pixel tile.
            pl.BlockSpec((None, tm, LANES), lambda b, m: (b, m, 0)),
        ],
        out_specs=pl.BlockSpec((None, None, 3 * n_classes, LANES),
                               lambda b, m: (b, m, 0, 0)),
        compiler_params=pltpu.CompilerParams(
            # no cross-step state -> fully parallel grid (megacore on v7x)
            dimension_semantics=("parallel", "parallel"),
            vmem_limit_bytes=int(vmem_limit)),
    )(x, t)

    # Tiny finalize in plain JAX: collapse tiles/lanes, per-class dice, weight.
    sums = jnp.sum(partials, axis=(0, 1, 3))      # (3*C,)
    inter = sums[:n_classes]
    psq = sums[n_classes:2 * n_classes]
    cnt = sums[2 * n_classes:]
    smooth = jnp.float32(1e-10)
    dice = 1.0 - inter / (psq + cnt + smooth)     # per-class dice loss
    return jnp.sum(dice * w) / jnp.float32(n_classes)


# ----------------------------------------------------------------------------
# Pure-JAX reference (direct port of the PyTorch module) for correctness check.
# ----------------------------------------------------------------------------
def _dice_loss_ref(inputs, target, n_classes, weight=None, softmax=False):
    inputs = inputs.astype(jnp.float32)
    if softmax:
        inputs = jax.nn.softmax(inputs, axis=1)
    B, C, H, W = inputs.shape
    tgt = target.reshape(B, H, W)
    onehot = jax.nn.one_hot(tgt, n_classes, axis=1, dtype=jnp.float32)
    if weight is None:
        weight = [1.0] * n_classes
    smooth = 1e-10
    loss = 0.0
    for i in range(n_classes):
        score = inputs[:, i]
        ti = onehot[:, i]
        inter = jnp.sum(score * ti)
        union = jnp.sum(score * score) + jnp.sum(ti * ti) + smooth
        loss = loss + (1.0 - inter / union) * weight[i]
    return loss / n_classes


if __name__ == "__main__":
    key = jax.random.PRNGKey(0)
    k1, k2, k3, k4, k5, k6 = jax.random.split(key, 6)

    # 1) f32 logits + fused in-kernel softmax (128-aligned H*W -> no padding).
    B, C, H, W = 2, 4, 16, 16
    logits = jax.random.normal(k1, (B, C, H, W), dtype=jnp.float32)
    labels = jax.random.randint(k2, (B, 1, H, W), 0, C, dtype=jnp.int32)
    loss_sm = dice_loss(logits, labels, n_classes=C, softmax=True)
    ref_sm = _dice_loss_ref(logits, labels, n_classes=C, softmax=True)

    # 2) pre-softmaxed f32 probabilities, per-class weights, int8 labels.
    probs = jax.nn.softmax(logits, axis=1)
    wts = [0.5, 1.0, 2.0, 1.5]
    labels_i8 = labels.astype(jnp.int8)
    loss_pr = dice_loss(probs, labels_i8, n_classes=C, weight=wts, softmax=False)
    ref_pr = _dice_loss_ref(probs, labels, n_classes=C, weight=wts,
                            softmax=False)

    # 3) non-128-aligned spatial size -> minimal pad + in-kernel pixel mask.
    B2, C2, H2, W2 = 2, 3, 20, 20
    logits2 = jax.random.normal(k3, (B2, C2, H2, W2), dtype=jnp.float32)
    labels2 = jax.random.randint(k4, (B2, H2, W2), 0, C2, dtype=jnp.int32)
    loss_pad = dice_loss(logits2, labels2, n_classes=C2, softmax=True)
    ref_pad = _dice_loss_ref(logits2, labels2, n_classes=C2, softmax=True)

    # 4) bf16 predictions + int8 labels, B=1 (forces >=2 pixel tiles for v7x
    #    megacore) with a ragged grid tail (104 rows, 64-row tiles) so the
    #    out-of-bounds tile mask is exercised.
    B3, C3, H3, W3 = 1, 3, 104, 128
    logits3 = jax.random.normal(k5, (B3, C3, H3, W3),
                                dtype=jnp.float32).astype(jnp.bfloat16)
    labels3 = jax.random.randint(k6, (B3, H3, W3), 0, C3,
                                 dtype=jnp.int32).astype(jnp.int8)
    loss_bf = dice_loss(logits3, labels3, n_classes=C3, softmax=True)
    ref_bf = _dice_loss_ref(logits3.astype(jnp.float32), labels3,
                            n_classes=C3, softmax=True)

    for v in (loss_sm, loss_pr, loss_pad, loss_bf):
        jax.block_until_ready(v)
        assert v.shape == () and bool(jnp.isfinite(v))

    assert bool(jnp.allclose(loss_sm, ref_sm, rtol=1e-4, atol=1e-5)), (loss_sm, ref_sm)
    assert bool(jnp.allclose(loss_pr, ref_pr, rtol=1e-4, atol=1e-5)), (loss_pr, ref_pr)
    assert bool(jnp.allclose(loss_pad, ref_pad, rtol=1e-4, atol=1e-5)), (loss_pad, ref_pad)
    assert bool(jnp.allclose(loss_bf, ref_bf, rtol=1e-3, atol=1e-5)), (loss_bf, ref_bf)

    print("KERNEL_OK")
</pallas_src>

<mosaic_0001>
module attributes {stable_mosaic.version = 11 : i64} {
  func.func @_dice_partial_kernel(%arg0: i32, %arg1: i32, %arg2: memref<1x4x2x128xf32, #tpu.memory_space<vmem>>, %arg3: memref<1x2x128xi32, #tpu.memory_space<vmem>>, %arg4: memref<1x1x12x128xf32, #tpu.memory_space<vmem>>) attributes {dimension_semantics = [#tpu.dimension_semantics<parallel>, #tpu.dimension_semantics<parallel>], iteration_bounds = array<i64: 2, 1>, scalar_prefetch = 0 : i64, scratch_operands = 0 : i64, tpu.core_type = #tpu.core_type<tc>, window_params = [{transform_indices = @transform_0, window_bounds = array<i64: 1, 4, 2, 128>}, {transform_indices = @transform_1, window_bounds = array<i64: 1, 2, 128>}, {transform_indices = @transform_2, window_bounds = array<i64: 1, 1, 12, 128>}]} {
    %c0 = arith.constant 0 : index
    %c0_0 = arith.constant 0 : index
    %c0_1 = arith.constant 0 : index
    %c0_2 = arith.constant 0 : index
    %0 = vector.load %arg2[%c0, %c0_0, %c0_1, %c0_2] : memref<1x4x2x128xf32, #tpu.memory_space<vmem>>, vector<1x4x2x128xf32>
    %1 = vector.shape_cast %0 : vector<1x4x2x128xf32> to vector<4x2x128xf32>
    %c0_3 = arith.constant 0 : index
    %c0_4 = arith.constant 0 : index
    %c0_5 = arith.constant 0 : index
    %2 = vector.load %arg3[%c0_3, %c0_4, %c0_5] : memref<1x2x128xi32, #tpu.memory_space<vmem>>, vector<1x2x128xi32>
    %3 = vector.shape_cast %2 : vector<1x2x128xi32> to vector<2x128xi32>
    %cst = arith.constant dense<0xFF800000> : vector<2x128xf32>
    %4 = vector.multi_reduction <maximumf>, %1, %cst [0] : vector<4x2x128xf32> to vector<2x128xf32>
    %5 = vector.shape_cast %4 : vector<2x128xf32> to vector<1x2x128xf32>
    %6 = vector.broadcast %5 : vector<1x2x128xf32> to vector<4x2x128xf32>
    %7 = arith.subf %1, %6 : vector<4x2x128xf32>
    %8 = math.exp %7 : vector<4x2x128xf32>
    %cst_6 = arith.constant dense<0.000000e+00> : vector<2x128xf32>
    %9 = vector.multi_reduction <add>, %8, %cst_6 [0] : vector<4x2x128xf32> to vector<2x128xf32>
    %10 = vector.shape_cast %9 : vector<2x128xf32> to vector<1x2x128xf32>
    %11 = tpu.reciprocal %10 {approx = true} : vector<1x2x128xf32> -> vector<1x2x128xf32>
    %12 = arith.mulf %10, %11 : vector<1x2x128xf32>
    %cst_7 = arith.constant 2.000000e+00 : f32
    %13 = vector.broadcast %cst_7 : f32 to vector<1x2x128xf32>
    %14 = arith.subf %13, %12 : vector<1x2x128xf32>
    %15 = arith.mulf %11, %14 : vector<1x2x128xf32>
    %16 = vector.broadcast %15 : vector<1x2x128xf32> to vector<4x2x128xf32>
    %17 = arith.mulf %8, %16 : vector<4x2x128xf32>
    %18 = arith.mulf %17, %17 : vector<4x2x128xf32>
    %cst_8 = arith.constant dense<0.000000e+00> : vector<4x128xf32>
    %19 = vector.multi_reduction <add>, %18, %cst_8 [1] : vector<4x2x128xf32> to vector<4x128xf32>
    %c0_i32 = arith.constant 0 : i32
    %20 = vector.broadcast %c0_i32 : i32 to vector<2x128xi32>
    %21 = arith.cmpi eq, %3, %20 : vector<2x128xi32>
    %22 = vector.extract_strided_slice %17 {offsets = [0, 0, 0], sizes = [1, 2, 128], strides = [1, 1, 1]} : vector<4x2x128xf32> to vector<1x2x128xf32>
    %23 = vector.shape_cast %22 : vector<1x2x128xf32> to vector<2x128xf32>
    %cst_9 = arith.constant 0.000000e+00 : f32
    %24 = vector.broadcast %cst_9 : f32 to vector<2x128xf32>
    %25 = arith.select %21, %23, %24 : vector<2x128xi1>, vector<2x128xf32>
    %cst_10 = arith.constant dense<0.000000e+00> : vector<128xf32>
    %26 = vector.multi_reduction <add>, %25, %cst_10 [0] : vector<2x128xf32> to vector<128xf32>
    %27 = vector.shape_cast %26 : vector<128xf32> to vector<1x128xf32>
    %cst_11 = arith.constant 1.000000e+00 : f32
    %cst_12 = arith.constant 0.000000e+00 : f32
    %28 = vector.broadcast %cst_11 : f32 to vector<2x128xf32>
    %29 = vector.broadcast %cst_12 : f32 to vector<2x128xf32>
    %30 = arith.select %21, %28, %29 : vector<2x128xi1>, vector<2x128xf32>
    %cst_13 = arith.constant dense<0.000000e+00> : vector<128xf32>
    %31 = vector.multi_reduction <add>, %30, %cst_13 [0] : vector<2x128xf32> to vector<128xf32>
    %32 = vector.shape_cast %31 : vector<128xf32> to vector<1x128xf32>
    %c1_i32 = arith.constant 1 : i32
    %33 = vector.broadcast %c1_i32 : i32 to vector<2x128xi32>
    %34 = arith.cmpi eq, %3, %33 : vector<2x128xi32>
    %35 = vector.extract_strided_slice %17 {offsets = [1, 0, 0], sizes = [1, 2, 128], strides = [1, 1, 1]} : vector<4x2x128xf32> to vector<1x2x128xf32>
    %36 = vector.shape_cast %35 : vector<1x2x128xf32> to vector<2x128xf32>
    %cst_14 = arith.constant 0.000000e+00 : f32
    %37 = vector.broadcast %cst_14 : f32 to vector<2x128xf32>
    %38 = arith.select %34, %36, %37 : vector<2x128xi1>, vector<2x128xf32>
    %cst_15 = arith.constant dense<0.000000e+00> : vector<128xf32>
    %39 = vector.multi_reduction <add>, %38, %cst_15 [0] : vector<2x128xf32> to vector<128xf32>
    %40 = vector.shape_cast %39 : vector<128xf32> to vector<1x128xf32>
    %cst_16 = arith.constant 1.000000e+00 : f32
    %cst_17 = arith.constant 0.000000e+00 : f32
    %41 = vector.broadcast %cst_16 : f32 to vector<2x128xf32>
    %42 = vector.broadcast %cst_17 : f32 to vector<2x128xf32>
    %43 = arith.select %34, %41, %42 : vector<2x128xi1>, vector<2x128xf32>
    %cst_18 = arith.constant dense<0.000000e+00> : vector<128xf32>
    %44 = vector.multi_reduction <add>, %43, %cst_18 [0] : vector<2x128xf32> to vector<128xf32>
    %45 = vector.shape_cast %44 : vector<128xf32> to vector<1x128xf32>
    %c2_i32 = arith.constant 2 : i32
    %46 = vector.broadcast %c2_i32 : i32 to vector<2x128xi32>
    %47 = arith.cmpi eq, %3, %46 : vector<2x128xi32>
    %48 = vector.extract_strided_slice %17 {offsets = [2, 0, 0], sizes = [1, 2, 128], strides = [1, 1, 1]} : vector<4x2x128xf32> to vector<1x2x128xf32>
    %49 = vector.shape_cast %48 : vector<1x2x128xf32> to vector<2x128xf32>
    %cst_19 = arith.constant 0.000000e+00 : f32
    %50 = vector.broadcast %cst_19 : f32 to vector<2x128xf32>
    %51 = arith.select %47, %49, %50 : vector<2x128xi1>, vector<2x128xf32>
    %cst_20 = arith.constant dense<0.000000e+00> : vector<128xf32>
    %52 = vector.multi_reduction <add>, %51, %cst_20 [0] : vector<2x128xf32> to vector<128xf32>
    %53 = vector.shape_cast %52 : vector<128xf32> to vector<1x128xf32>
    %cst_21 = arith.constant 1.000000e+00 : f32
    %cst_22 = arith.constant 0.000000e+00 : f32
    %54 = vector.broadcast %cst_21 : f32 to vector<2x128xf32>
    %55 = vector.broadcast %cst_22 : f32 to vector<2x128xf32>
    %56 = arith.select %47, %54, %55 : vector<2x128xi1>, vector<2x128xf32>
    %cst_23 = arith.constant dense<0.000000e+00> : vector<128xf32>
    %57 = vector.multi_reduction <add>, %56, %cst_23 [0] : vector<2x128xf32> to vector<128xf32>
    %58 = vector.shape_cast %57 : vector<128xf32> to vector<1x128xf32>
    %c3_i32 = arith.constant 3 : i32
    %59 = vector.broadcast %c3_i32 : i32 to vector<2x128xi32>
    %60 = arith.cmpi eq, %3, %59 : vector<2x128xi32>
    %61 = vector.extract_strided_slice %17 {offsets = [3, 0, 0], sizes = [1, 2, 128], strides = [1, 1, 1]} : vector<4x2x128xf32> to vector<1x2x128xf32>
    %62 = vector.shape_cast %61 : vector<1x2x128xf32> to vector<2x128xf32>
    %cst_24 = arith.constant 0.000000e+00 : f32
    %63 = vector.broadcast %cst_24 : f32 to vector<2x128xf32>
    %64 = arith.select %60, %62, %63 : vector<2x128xi1>, vector<2x128xf32>
    %cst_25 = arith.constant dense<0.000000e+00> : vector<128xf32>
    %65 = vector.multi_reduction <add>, %64, %cst_25 [0] : vector<2x128xf32> to vector<128xf32>
    %66 = vector.shape_cast %65 : vector<128xf32> to vector<1x128xf32>
    %cst_26 = arith.constant 1.000000e+00 : f32
    %cst_27 = arith.constant 0.000000e+00 : f32
    %67 = vector.broadcast %cst_26 : f32 to vector<2x128xf32>
    %68 = vector.broadcast %cst_27 : f32 to vector<2x128xf32>
    %69 = arith.select %60, %67, %68 : vector<2x128xi1>, vector<2x128xf32>
    %cst_28 = arith.constant dense<0.000000e+00> : vector<128xf32>
    %70 = vector.multi_reduction <add>, %69, %cst_28 [0] : vector<2x128xf32> to vector<128xf32>
    %71 = vector.shape_cast %70 : vector<128xf32> to vector<1x128xf32>
    %72 = tpu.concatenate %27, %40, %53, %66, %19, %32, %45, %58, %71 in 0 : vector<1x128xf32>, vector<1x128xf32>, vector<1x128xf32>, vector<1x128xf32>, vector<4x128xf32>, vector<1x128xf32>, vector<1x128xf32>, vector<1x128xf32>, vector<1x128xf32> -> vector<12x128xf32>
    %c0_29 = arith.constant 0 : index
    %c0_30 = arith.constant 0 : index
    %c0_31 = arith.constant 0 : index
    %c0_32 = arith.constant 0 : index
    %73 = vector.load %arg4[%c0_29, %c0_30, %c0_31, %c0_32] : memref<1x1x12x128xf32, #tpu.memory_space<vmem>>, vector<1x1x12x128xf32>
    %74 = vector.shape_cast %73 : vector<1x1x12x128xf32> to vector<12x128xf32>
    %75 = vector.shape_cast %72 : vector<12x128xf32> to vector<1x1x12x128xf32>
    tpu.vector_store %arg4[%c0_29, %c0_30, %c0_31, %c0_32], %75 {strides = array<i32>} : memref<1x1x12x128xf32, #tpu.memory_space<vmem>>, vector<1x1x12x128xf32>,
    return
  }
  func.func @transform_0(%arg0: i32, %arg1: i32) -> (i32, i32, i32, i32) {
    %c0_i32 = arith.constant 0 : i32
    %c0_i32_0 = arith.constant 0 : i32
    %c0_i32_1 = arith.constant 0 : i32
    return %arg0, %c0_i32, %arg1, %c0_i32_0 : i32, i32, i32, i32
  }
  func.func @transform_1(%arg0: i32, %arg1: i32) -> (i32, i32, i32) {
    %c0_i32 = arith.constant 0 : i32
    %c0_i32_0 = arith.constant 0 : i32
    return %arg0, %arg1, %c0_i32 : i32, i32, i32
  }
  func.func @transform_2(%arg0: i32, %arg1: i32) -> (i32, i32, i32, i32) {
    %c0_i32 = arith.constant 0 : i32
    %c0_i32_0 = arith.constant 0 : i32
    %c0_i32_1 = arith.constant 0 : i32
    return %arg0, %arg1, %c0_i32, %c0_i32_0 : i32, i32, i32, i32
  }
}

</mosaic_0001>

<llo_original>
// kernel: tpu_custom_call.1
$region0: #{tpu_custom_call.1}
  #allocation0 [shape = 'u32[]', space=smem, size = 0x4, offset = 0x4, fixed_abs, tag = 'smem constant byte address 0x4 - core index']
  #allocation1 [shape = 'u32[144,128]{1,0:T(1,128)}', space=vmem, size = 0x12000, scoped, tag = 'internal scratch']
  %s0 = inlined_call_operand.hbm [shape: f32[2,4,2,128], index: 0, kind: input, shape index: {}]
  %s1 = inlined_call_operand.hbm [shape: s32[2,2,128], index: 1, kind: input, shape index: {}]
  %s2 = inlined_call_operand.vmem [shape: f32[2,1,12,128], index: 2, kind: output, shape index: {}]
  %s3 = sld [smem:[#allocation0]]
  $region49: #{tpu_custom_call.1} parent=0
    _
  %s5 = ssub.s32 1, %s3
  %s6 = scalar_select 0, %s5, %s3
  $region1: #{tpu_custom_call.1} parent=0
    #allocation2 [shape = 'u8[8192]{0}', space=vmem, size = 0x2000, scoped, tag = 'input window, operand 0']
    #allocation3 [shape = 's32[2]{0}', space=sflag, size = 0x8, scoped, tag = 'scoped memory for tpu_custom_call.1']
    #allocation4 [shape = 'u8[2048]{0}', space=vmem, size = 0x800, scoped, tag = 'input window, operand 1']
    #allocation5 [shape = 's32[2]{0}', space=sflag, size = 0x8, scoped, tag = 'scoped memory for tpu_custom_call.1']
    %7 = vsyncpa [#allocation3], 0
    %s8 = scalar_lea.sflag [#allocation3], 1
    %9 = vsyncpa %s8, 0
    %10 = vsyncpa [#allocation5], 0
    %s11 = scalar_lea.sflag [#allocation5], 1
    %12 = vsyncpa %s11, 0
    loop: start=0, step=1, limit=4
    $region2: #{tpu_custom_call.1} parent=1 // loop_pre_header
      _
    $region3: #{tpu_custom_call.1} parent=1 // loop_header
      %s14 = sphi 0, %s18
      %p15 = scmp.ge.s32.totalorder %s14, 4
      %s21 = sphi 0, %s33
      %s22 = sphi 0, %s29
      %s23 = sphi 0, %s21
      %s24 = sphi 0, %s22
      %s25 = sphi 0, %s23
      %s26 = sphi 0, %s24
      %s38 = sphi 0, %s40
      %s41 = sphi 0, %s38
      %s42 = sphi 0, %s41
      %s58 = sphi 0, %s42
      %s66 = sphi 0, %s68
      %s69 = sphi 0, %s66
      %s70 = sphi 0, %s69
      %s86 = sphi 0, %s70
      %s94 = sphi 0, %s96
      %s97 = sphi 0, %s94
      %s98 = sphi 0, %s97
      %s114 = sphi 0, %s98
    $region4: #{tpu_custom_call.1} parent=1 // loop_header_branch
      %17 = sbr.rel (%p15) target = $region8
    $region5: #{tpu_custom_call.1} parent=1 // loop_body
      %s19 = ssub.s32 %s14, 1
      %s20 = ssub.s32 %s14, 2
      %s27 = sadd.s32 1, %s22
      %p28 = scmp.ge.s32.totalorder %s27, 1
      %s29 = scalar_select %p28, 0, %s27
      %s30 = sadd.s32 1, %s21
      %s31 = scalar_select %p28, %s30, %s21
      %p32 = scmp.ge.s32.totalorder %s31, 2
      %s33 = scalar_select %p32, 0, %s31
      %s34 = ssub.s32 %s21, %s33
      %s35 = ssub.s32 %s22, %s29
      %s36 = sor.u32 %s34, %s35
      %p37 = scmp.eq.s32.totalorder %s36, 0
      %s39 = sadd.s32 %s38, 1
      %s40 = scalar_select %p37, %s38, %s39
      %p43 = pneg %p37
      %p44 = scmp.eq.s32.totalorder %s14, 1
      %p45 = por %p43, %p44
      %p46 = scmp.ne.s32.totalorder %s38, %s41
      %p47 = scmp.eq.s32.totalorder %s14, 0
      %p48 = por %p46, %p47
      %p49 = scmp.ne.s32.totalorder %s38, %s41
      %p50 = scmp.eq.s32.totalorder %s19, 1
      %p51 = por %p49, %p50
      %p52 = scmp.ne.s32.totalorder %s41, %s42
      %p53 = scmp.eq.s32.totalorder %s19, 0
      %p54 = por %p52, %p53
      %p55 = scmp.ne.s32.totalorder %s41, %s42
      %p56 = scmp.eq.s32.totalorder %s20, 1
      %p57 = por %p55, %p56
      %p59 = scmp.ne.s32.totalorder %s42, %s58
      %p60 = scmp.eq.s32.totalorder %s20, 0
      %p61 = por %p59, %p60
      %s62 = ssub.s32 %s21, %s33
      %s63 = ssub.s32 %s22, %s29
      %s64 = sor.u32 %s62, %s63
      %p65 = scmp.eq.s32.totalorder %s64, 0
      %s67 = sadd.s32 %s66, 1
      %s68 = scalar_select %p65, %s66, %s67
      %p71 = pneg %p65
      %p72 = scmp.eq.s32.totalorder %s14, 1
      %p73 = por %p71, %p72
      %p74 = scmp.ne.s32.totalorder %s66, %s69
      %p75 = scmp.eq.s32.totalorder %s14, 0
      %p76 = por %p74, %p75
      %p77 = scmp.ne.s32.totalorder %s66, %s69
      %p78 = scmp.eq.s32.totalorder %s19, 1
      %p79 = por %p77, %p78
      %p80 = scmp.ne.s32.totalorder %s69, %s70
      %p81 = scmp.eq.s32.totalorder %s19, 0
      %p82 = por %p80, %p81
      %p83 = scmp.ne.s32.totalorder %s69, %s70
      %p84 = scmp.eq.s32.totalorder %s20, 1
      %p85 = por %p83, %p84
      %p87 = scmp.ne.s32.totalorder %s70, %s86
      %p88 = scmp.eq.s32.totalorder %s20, 0
      %p89 = por %p87, %p88
      %s90 = ssub.s32 %s21, %s33
      %s91 = ssub.s32 %s22, %s29
      %s92 = sor.u32 %s90, %s91
      %p93 = scmp.eq.s32.totalorder %s92, 0
      %s95 = sadd.s32 %s94, 1
      %s96 = scalar_select %p93, %s94, %s95
      %p99 = pneg %p93
      %p100 = scmp.eq.s32.totalorder %s14, 1
      %p101 = por %p99, %p100
      %p102 = scmp.ne.s32.totalorder %s94, %s97
      %p103 = scmp.eq.s32.totalorder %s14, 0
      %p104 = por %p102, %p103
      %p105 = scmp.ne.s32.totalorder %s94, %s97
      %p106 = scmp.eq.s32.totalorder %s19, 1
      %p107 = por %p105, %p106
      %p108 = scmp.ne.s32.totalorder %s97, %s98
      %p109 = scmp.eq.s32.totalorder %s19, 0
      %p110 = por %p108, %p109
      %p111 = scmp.ne.s32.totalorder %s97, %s98
      %p112 = scmp.eq.s32.totalorder %s20, 1
      %p113 = por %p111, %p112
      %p115 = scmp.ne.s32.totalorder %s98, %s114
      %p116 = scmp.eq.s32.totalorder %s20, 0
      %p117 = por %p115, %p116
      %p118 = scmp.le.s32.totalorder 1, %s14
      %p119 = scmp.lt.s32.totalorder %s14, 3
      %p120 = pnand %p118, %p119
      %p121 = pneg %p120
      // Predicated region
      $region9: #{tpu_custom_call.1} parent=5 // pred_check
        _
      $region10: #{tpu_custom_call.1} parent=5 // pred_check_branch
        %123 = sbr.rel (%p120) target = $region12
      $region11: #{tpu_custom_call.1} parent=5 // pred_region
        %s124 = ssub.s32 %s14, 1
      $region12: #{tpu_custom_call.1} parent=5 // pred_fallthru
        _
      %p125 = scmp.lt.s32.totalorder %s14, 2
      // Predicated region
      $region13: #{tpu_custom_call.1} parent=5 // pred_check
        %p126 = pneg %p125
      $region14: #{tpu_custom_call.1} parent=5 // pred_check_branch
        %128 = sbr.rel (%p126) target = $region16
      $region15: #{tpu_custom_call.1} parent=5 // pred_region
        // Predicated region
        $region17: #{tpu_custom_call.1} parent=15 // pred_check
          %p129 = pneg %p48
        $region18: #{tpu_custom_call.1} parent=15 // pred_check_branch
          %131 = sbr.rel (%p129) target = $region20
        $region19: #{tpu_custom_call.1} parent=15 // pred_region
          %s132 = sand.u32 %s38, 1
          %s133 = scalar_lea.sflag [#allocation3], %s132
          %s134 = sand.u32 %s38, 1
          %s135 = smul.addr %s134, 8
          %s136 = scalar_lea.vmem [#allocation2], %s135
          %s138 = ssub.s32 128, 128
          %139 = vsyncadd %s133, %s138
          %s140 = smul.addr %s21, 4
          %s141 = sadd.s32 %s22, %s140
          %s142 = smul.addr %s141, 32
          %s143 = scalar_lea.hbm %s0, %s142
          %s144 = sshll.u32 %s136, 4
          %s145 = int_to_ptr.vmem [resolvable:$true] %s144
          %150 = dma.hbm_to_vmem [thread:$0]  %s143, 128, %s145, %s133, 32, 32, 2
        $region20: #{tpu_custom_call.1} parent=15 // pred_fallthru
          _
        // Predicated region
        $region21: #{tpu_custom_call.1} parent=15 // pred_check
          %p151 = pneg %p76
        $region22: #{tpu_custom_call.1} parent=15 // pred_check_branch
          %153 = sbr.rel (%p151) target = $region24
        $region23: #{tpu_custom_call.1} parent=15 // pred_region
          %s154 = sand.u32 %s66, 1
          %s155 = scalar_lea.sflag [#allocation5], %s154
          %s156 = sand.u32 %s66, 1
          %s157 = smul.addr %s156, 2
          %s158 = scalar_lea.vmem [#allocation4], %s157
          %s160 = ssub.s32 32, 32
          %161 = vsyncadd %s155, %s160
          %s162 = sadd.s32 %s22, %s21
          %s163 = smul.addr %s162, 32
          %s164 = scalar_lea.hbm %s1, %s163
          %s166 = sshll.u32 %s158, 4
          %s167 = int_to_ptr.vmem [resolvable:$true] %s166
          %169 = dma.hbm_to_vmem [thread:$0]  %s164, 32, %s167, %s155
        $region24: #{tpu_custom_call.1} parent=15 // pred_fallthru
          _
      $region16: #{tpu_custom_call.1} parent=5 // pred_fallthru
        _
      %p170 = scmp.le.s32.totalorder 1, %s14
      %p171 = scmp.lt.s32.totalorder %s14, 3
      %p172 = pnand %p170, %p171
      %p173 = pneg %p172
      // Predicated region
      $region25: #{tpu_custom_call.1} parent=5 // pred_check
        _
      $region26: #{tpu_custom_call.1} parent=5 // pred_check_branch
        %175 = sbr.rel (%p172) target = $region28
      $region27: #{tpu_custom_call.1} parent=5 // pred_region
        %s176 = ssub.s32 %s14, 1
        %s177 = sand.u32 %s41, 1
        %s178 = scalar_lea.sflag [#allocation3], %s177
        %s179 = sand.u32 %s41, 1
        %s180 = smul.addr %s179, 8
        %s181 = scalar_lea.vmem [#allocation2], %s180
        // Predicated region
        $region29: #{tpu_custom_call.1} parent=27 // pred_check
          %p182 = pneg %p54
        $region30: #{tpu_custom_call.1} parent=27 // pred_check_branch
          %184 = sbr.rel (%p182) target = $region32
        $region31: #{tpu_custom_call.1} parent=27 // pred_region
          %185 = dma.done %s178, 128
        $region32: #{tpu_custom_call.1} parent=27 // pred_fallthru
          _
        %s186 = sand.u32 %s69, 1
        %s187 = scalar_lea.sflag [#allocation5], %s186
        %s188 = sand.u32 %s69, 1
        %s189 = smul.addr %s188, 2
        %s190 = scalar_lea.vmem [#allocation4], %s189
        // Predicated region
        $region33: #{tpu_custom_call.1} parent=27 // pred_check
          %p191 = pneg %p82
        $region34: #{tpu_custom_call.1} parent=27 // pred_check_branch
          %193 = sbr.rel (%p191) target = $region36
        $region35: #{tpu_custom_call.1} parent=27 // pred_region
          %194 = dma.done %s187, 32
        $region36: #{tpu_custom_call.1} parent=27 // pred_fallthru
          _
        %s195 = sand.u32 %s41, 1
        %s196 = scalar_lea.sflag [#allocation3], %s195
        %s197 = sand.u32 %s41, 1
        %s198 = smul.addr %s197, 8
        %s199 = scalar_lea.vmem [#allocation2], %s198
        %p200 = pneg %p54
        %p201 = pneg %p51
        %s202 = sand.u32 %s69, 1
        %s203 = scalar_lea.sflag [#allocation5], %s202
        %s204 = sand.u32 %s69, 1
        %s205 = smul.addr %s204, 2
        %s206 = scalar_lea.vmem [#allocation4], %s205
        %p207 = pneg %p82
        %p208 = pneg %p79
        %p209 = pneg %p110
        %p210 = pneg %p107
        %p211 = scmp.lt.s32.totalorder %s23, 1
        %s212 = scalar_select %p211, %s23, 1
        %p213 = scmp.lt.s32.totalorder %s24, 0
        %s214 = scalar_select %p213, %s24, 0
        %s215 = smul.addr %s214, 2
        %s216 = smul.addr %s212, 2
        %s217 = sadd.s32 %s215, %s216
        %s218 = smul.addr %s217, 8
        %s219 = scalar_lea.vmem %s2, %s218
        %p220 = scmp.lt.s32.totalorder %s23, 1
        %s221 = scalar_select %p220, %s23, 1
        %p222 = scmp.lt.s32.totalorder %s24, 0
        %s223 = scalar_select %p222, %s24, 0
        %s224 = smul.addr %s223, 2
        %s225 = smul.addr %s221, 2
        %s226 = sadd.s32 %s224, %s225
        %s227 = smul.addr %s226, 8
        %s228 = scalar_lea.vmem %s2, %s227
        %v229 = vld [vmem:[%s181] sm:$0x3]
        %v230 = vld [vmem:[%s181 + $0x2] sm:$0x3]
        %v231 = vld [vmem:[%s181 + $0x4] sm:$0x3]
        %v232 = vld [vmem:[%s181 + $0x6] sm:$0x3]
        %v233 = vld [vmem:[%s190] sm:$0x3]
        %vm234 = vcmask 1041408
        %v235 = vsel %vm234, %v229, -inf
        %v236 = vsel %vm234, %v230, -inf
        %v237 = vsel %vm234, %v231, -inf
        %v238 = vsel %vm234, %v232, -inf
        %v239 = vmax.f32 %v235, %v236
        %v240 = vmax.f32 %v237, %v238
        %v241 = vmax.f32 %v239, %v240
        %v242 = vsub.f32 %v229, %v241
        %v243 = vsub.f32 %v230, %v241
        %v244 = vsub.f32 %v231, %v241
        %v245 = vsub.f32 %v232, %v241
        %v246 = vmul.f32 %v242, 1.442695
        %v247 = vpow.pop %v246
        %v248 = vmul.f32 %v243, 1.442695
        %v249 = vpow.pop %v248
        %v250 = vmul.f32 %v244, 1.442695
        %v251 = vpow.pop %v250
        %v252 = vmul.f32 %v245, 1.442695
        %v253 = vpow.pop %v252
        %v254 = vsel %vm234, %v247, 0.0
        %v255 = vsel %vm234, %v249, 0.0
        %v256 = vadd.f32 %v254, %v255
        %v257 = vsel %vm234, %v251, 0.0
        %v258 = vadd.f32 %v256, %v257
        %v259 = vsel %vm234, %v253, 0.0
        %v260 = vadd.f32 %v258, %v259
        %v261 = vrcp.pop %v260
        %v262 = vmul.f32 %v260, %v261
        %v263 = vsub.f32 2.0, %v262
        %v264 = vmul.f32 %v261, %v263
        %v265 = vmul.f32 %v247, %v264
        %v266 = vmul.f32 %v249, %v264
        %v267 = vmul.f32 %v251, %v264
        %v268 = vmul.f32 %v253, %v264
        %v269 = vmul.f32 %v265, %v265
        %v270 = vmul.f32 %v266, %v266
        %v271 = vmul.f32 %v267, %v267
        %v272 = vmul.f32 %v268, %v268
        %v273 = vsel %vm234, %v269, 0.0
        %v274 = vrot.slane %v273, 4
        %v275 = vadd.f32 %v273, %v274
        %v276 = vrot.slane %v275, 2
        %v277 = vadd.f32 %v275, %v276
        %v278 = vrot.slane %v277, 1
        %v279 = vadd.f32 %v277, %v278
        %v280 = vsel %vm234, %v270, 0.0
        %v281 = vrot.slane %v280, 4
        %v282 = vadd.f32 %v280, %v281
        %v283 = vrot.slane %v282, 2
        %v284 = vadd.f32 %v282, %v283
        %v285 = vrot.slane %v284, 1
        %v286 = vadd.f32 %v284, %v285
        %v287 = vsel %vm234, %v271, 0.0
        %v288 = vrot.slane %v287, 4
        %v289 = vadd.f32 %v287, %v288
        %v290 = vrot.slane %v289, 2
        %v291 = vadd.f32 %v289, %v290
        %v292 = vrot.slane %v291, 1
        %v293 = vadd.f32 %v291, %v292
        %v294 = vsel %vm234, %v272, 0.0
        %v295 = vrot.slane %v294, 4
        %v296 = vadd.f32 %v294, %v295
        %v297 = vrot.slane %v296, 2
        %v298 = vadd.f32 %v296, %v297
        %v299 = vrot.slane %v298, 1
        %v300 = vadd.f32 %v298, %v299
        %vm301 = vcmp.eq.s32.totalorder %v233, 0
        %v302 = vsel %vm301, %v265, 0.0
        %v303 = vsel %vm234, %v302, 0.0
        %v304 = vrot.slane %v303, 4
        %v305 = vadd.f32 %v303, %v304
        %v306 = vrot.slane %v305, 2
        %v307 = vadd.f32 %v305, %v306
        %v308 = vrot.slane %v307, 1
        %v309 = vadd.f32 %v307, %v308
        %v310 = vsel %vm301, 1.0, 0.0
        %v311 = vsel %vm234, %v310, 0.0
        %v312 = vrot.slane %v311, 4
        %v313 = vadd.f32 %v311, %v312
        %v314 = vrot.slane %v313, 2
        %v315 = vadd.f32 %v313, %v314
        %v316 = vrot.slane %v315, 1
        %v317 = vadd.f32 %v315, %v316
        %vm318 = vcmp.eq.s32.totalorder %v233, 1
        %v319 = vsel %vm318, %v266, 0.0
        %v320 = vsel %vm234, %v319, 0.0
        %v321 = vrot.slane %v320, 4
        %v322 = vadd.f32 %v320, %v321
        %v323 = vrot.slane %v322, 2
        %v324 = vadd.f32 %v322, %v323
        %v325 = vrot.slane %v324, 1
        %v326 = vadd.f32 %v324, %v325
        %v327 = vsel %vm318, 1.0, 0.0
        %v328 = vsel %vm234, %v327, 0.0
        %v329 = vrot.slane %v328, 4
        %v330 = vadd.f32 %v328, %v329
        %v331 = vrot.slane %v330, 2
        %v332 = vadd.f32 %v330, %v331
        %v333 = vrot.slane %v332, 1
        %v334 = vadd.f32 %v332, %v333
        %vm335 = vcmp.eq.s32.totalorder %v233, 2
        %v336 = vsel %vm335, %v267, 0.0
        %v337 = vsel %vm234, %v336, 0.0
        %v338 = vrot.slane %v337, 4
        %v339 = vadd.f32 %v337, %v338
        %v340 = vrot.slane %v339, 2
        %v341 = vadd.f32 %v339, %v340
        %v342 = vrot.slane %v341, 1
        %v343 = vadd.f32 %v341, %v342
        %v344 = vsel %vm335, 1.0, 0.0
        %v345 = vsel %vm234, %v344, 0.0
        %v346 = vrot.slane %v345, 4
        %v347 = vadd.f32 %v345, %v346
        %v348 = vrot.slane %v347, 2
        %v349 = vadd.f32 %v347, %v348
        %v350 = vrot.slane %v349, 1
        %v351 = vadd.f32 %v349, %v350
        %vm352 = vcmp.eq.s32.totalorder %v233, 3
        %v353 = vsel %vm352, %v268, 0.0
        %v354 = vsel %vm234, %v353, 0.0
        %v355 = vrot.slane %v354, 4
        %v356 = vadd.f32 %v354, %v355
        %v357 = vrot.slane %v356, 2
        %v358 = vadd.f32 %v356, %v357
        %v359 = vrot.slane %v358, 1
        %v360 = vadd.f32 %v358, %v359
        %v361 = vsel %vm352, 1.0, 0.0
        %v362 = vsel %vm234, %v361, 0.0
        %v363 = vrot.slane %v362, 4
        %v364 = vadd.f32 %v362, %v363
        %v365 = vrot.slane %v364, 2
        %v366 = vadd.f32 %v364, %v365
        %v367 = vrot.slane %v366, 1
        %v368 = vadd.f32 %v366, %v367
        %vm373 = vcmask 1045509
        %v374 = vsel %vm373, %v286, %v279
        %vm375 = vcmask 1046534
        %v376 = vsel %vm375, %v293, %v374
        %vm377 = vcmask 1047559
        %v378 = vsel %vm377, %v300, %v376
        %vm380 = vcmask 1040384
        %v381 = vsel %vm380, %v309, %v326
        %v382 = vsel %vm234, %v381, %v343
        %vm383 = vcmask 1042432
        %v384 = vsel %vm383, %v382, %v360
        %vm385 = vcmask 1043456
        %v386 = vsel %vm385, %v384, %v378
        %v387 = vsel %vm380, %v317, %v334
        %v388 = vsel %vm234, %v387, %v351
        %v389 = vsel %vm383, %v388, %v368
        %390 = vst [vmem:[%s228] sm:$0xff] %v386
        %391 = vst [vmem:[%s228 + $0x8] sm:$0xf] %v389
        %p392 = scmp.lt.s32.totalorder %s23, 1
        %s393 = scalar_select %p392, %s23, 1
        %p394 = scmp.lt.s32.totalorder %s24, 0
        %s395 = scalar_select %p394, %s24, 0
        %s396 = smul.addr %s395, 2
        %s397 = smul.addr %s393, 2
        %s398 = sadd.s32 %s396, %s397
        %s399 = smul.addr %s398, 8
        %s400 = scalar_lea.vmem %s2, %s399
        // Predicated region
        $region37: #{tpu_custom_call.1} parent=27 // pred_check
          %p401 = pneg %p107
        $region38: #{tpu_custom_call.1} parent=27 // pred_check_branch
          %403 = sbr.rel (%p401) target = $region40
        $region39: #{tpu_custom_call.1} parent=27 // pred_region
          _
        $region40: #{tpu_custom_call.1} parent=27 // pred_fallthru
          _
      $region28: #{tpu_custom_call.1} parent=5 // pred_fallthru
        _
      %p404 = scmp.le.s32.totalorder 2, %s14
      // Predicated region
      $region41: #{tpu_custom_call.1} parent=5 // pred_check
        %p405 = pneg %p404
      $region42: #{tpu_custom_call.1} parent=5 // pred_check_branch
        %407 = sbr.rel (%p405) target = $region44
      $region43: #{tpu_custom_call.1} parent=5 // pred_region
        %s408 = ssub.s32 %s14, 2
        // Predicated region
        $region45: #{tpu_custom_call.1} parent=43 // pred_check
          %p409 = pneg %p113
        $region46: #{tpu_custom_call.1} parent=43 // pred_check_branch
          %411 = sbr.rel (%p409) target = $region48
        $region47: #{tpu_custom_call.1} parent=43 // pred_region
          %p412 = scmp.lt.s32.totalorder %s25, 1
          %s413 = scalar_select %p412, %s25, 1
          %p414 = scmp.lt.s32.totalorder %s26, 0
          %s415 = scalar_select %p414, %s26, 0
          %s416 = smul.addr %s415, 2
          %s417 = smul.addr %s413, 2
          %s418 = sadd.s32 %s416, %s417
          %s419 = smul.addr %s418, 8
          %s420 = scalar_lea.vmem %s2, %s419
        $region48: #{tpu_custom_call.1} parent=43 // pred_fallthru
          _
      $region44: #{tpu_custom_call.1} parent=5 // pred_fallthru
        _
    $region6: #{tpu_custom_call.1} parent=1 // loop_footer
      %s18 = sadd.s32 1, %s14
    $region7: #{tpu_custom_call.1} parent=1 // loop_footer_branch
      %13 = sbr.rel target = $region3
    $region8: #{tpu_custom_call.1} parent=1 // loop_exit
      _
    %421 = vsyncpa [#allocation3], 1
    %s422 = scalar_lea.sflag [#allocation3], 1
    %423 = vsyncpa %s422, 1
    %424 = vsyncpa [#allocation5], 1
    %s425 = scalar_lea.sflag [#allocation5], 1
    %426 = vsyncpa %s425, 1

</llo_original>
